<compile_context>
chip_gen: v7x
topology: tpu7x:2x2x1
jax: 0.10.0
libtpu: 0.0.40
codegen_flags: <defaults>
</compile_context>

<pallas_src>
import functools
import numpy as np
import jax
import jax.numpy as jnp
from jax.experimental import pallas as pl
from jax.experimental.pallas import tpu as pltpu

_EPS = 1e-5
_RESNET50_CFG = [(64, 3, 1), (128, 4, 2), (256, 6, 2), (512, 3, 2)]  # (width, blocks, stride)


def _round_up(x, m):
    return (x + m - 1) // m * m


def _pick_vmem_limit():
    """Per-generation scoped-VMEM budget: ~3/4 of physical (48 MiB on v7x, 96 MiB on
    v5e/v6e), conservative 32 MiB fallback if the query is unavailable."""
    try:
        cap = getattr(pltpu.get_tpu_info(), "vmem_capacity_bytes", None)
        if cap:
            return max(32 * 1024 * 1024, min(int(cap) * 3 // 4, 96 * 1024 * 1024))
    except Exception:
        pass
    return 32 * 1024 * 1024


_VMEM_LIMIT = _pick_vmem_limit()


# ----------------------------- Pallas kernels ------------------------------

def _mm_affine_kernel(a_ref, b_ref, s_ref, t_ref, o_ref, acc_ref, *, relu):
    """bf16 GEMM (f32 accumulator) with fused folded-BN affine + optional ReLU."""
    @pl.when(pl.program_id(2) == 0)
    def _():
        acc_ref[...] = jnp.zeros_like(acc_ref)

    acc_ref[...] += jnp.dot(a_ref[...], b_ref[...], preferred_element_type=jnp.float32)

    @pl.when(pl.program_id(2) == pl.num_programs(2) - 1)
    def _():
        y = acc_ref[...] * s_ref[...] + t_ref[...]      # f32 epilogue (v5e has no bf16 VPU)
        if relu:
            y = jnp.maximum(y, 0.0)
        o_ref[...] = y.astype(o_ref.dtype)


def _mm_affine_res_kernel(a_ref, b_ref, s_ref, t_ref, r_ref, o_ref, acc_ref, *, relu):
    """Same GEMM, plus a fused residual add before the ReLU (bottleneck conv3 path)."""
    @pl.when(pl.program_id(2) == 0)
    def _():
        acc_ref[...] = jnp.zeros_like(acc_ref)

    acc_ref[...] += jnp.dot(a_ref[...], b_ref[...], preferred_element_type=jnp.float32)

    @pl.when(pl.program_id(2) == pl.num_programs(2) - 1)
    def _():
        y = acc_ref[...] * s_ref[...] + t_ref[...] + r_ref[...].astype(jnp.float32)
        if relu:
            y = jnp.maximum(y, 0.0)
        o_ref[...] = y.astype(o_ref.dtype)


def _mean_reduce_kernel(x_ref, o_ref):
    # x_ref: (1, HW, C) bf16 -> o_ref: (1, 1, C) f32  (global average pool, per image)
    o_ref[...] = jnp.mean(x_ref[...].astype(jnp.float32), axis=1, keepdims=True)


# ----------------------------- Pallas wrappers ------------------------------

def matmul_affine(a, b, s, t, *, relu, residual=None, out_dtype=jnp.bfloat16):
    """out = maybe_relu((a @ b) * s + t [+ residual]); returns the full (M, Np) result.

    a: (M, K) float (cast to bf16); b: (K, Np) bf16 pre-packed weights with Np a 128
    multiple and K matching `a` exactly (no host-side K padding); s, t: (1, Np) f32;
    residual: (M, Np). Column padding of the output is produced as exact zeros via s=t=0.
    """
    M, K = a.shape
    Kb, Np = b.shape
    assert K == Kb, (K, Kb)

    a16 = a.astype(jnp.bfloat16)
    r16 = None if residual is None else residual.astype(jnp.bfloat16)

    # ---- tile selection (no host-side padding of the activation) ----
    # M: full-extent single block when small (legal even for odd M, e.g. the tiny fc whose
    #    bf16 block only half-fills (16,128) sublane packing -- fine for that cold layer);
    #    512-row tiles with a ragged pl.cdiv grid (masked partial last tile) when large.
    tm = 512 if M > 512 else M

    def _largest_divisor(dim, cands):
        for c in cands:
            if dim % c == 0:
                return c
        return None

    tn = _largest_divisor(Np, (512, 256, 128)) or Np       # Np is always a 128-multiple
    tk = _largest_divisor(K, (512, 384, 256, 128)) or K    # odd K (stem) -> one full block

    gi, gj, gk = pl.cdiv(M, tm), Np // tn, pl.cdiv(K, tk)

    # v7x megacore: keep >=2 steps on a "parallel" axis when feasible so both TCs get work.
    if gi == 1 and gj == 1:
        new_tn = next((c for c in (512, 256, 128) if Np % c == 0 and Np // c >= 2), None)
        if new_tn is not None:
            tn = new_tn
        elif M >= 16:
            tm = max(8, (M // 2) // 8 * 8)
        gi, gj = pl.cdiv(M, tm), Np // tn

    grid = (gi, gj, gk)

    a_spec = pl.BlockSpec((tm, tk), lambda i, j, k: (i, k))
    b_spec = pl.BlockSpec((tk, tn), lambda i, j, k: (k, j))
    v_spec = pl.BlockSpec((1, tn), lambda i, j, k: (0, j))
    o_spec = pl.BlockSpec((tm, tn), lambda i, j, k: (i, j))
    scratch = [pltpu.VMEM((tm, tn), jnp.float32)]

    out_bytes = np.dtype(out_dtype).itemsize
    cost = pl.CostEstimate(
        flops=2 * M * K * Np,
        transcendentals=0,
        bytes_accessed=(M * K * 2 + K * Np * 2 + M * Np * out_bytes
                        + (M * Np * 2 if residual is not None else 0) + Np * 8))
    cparams = pltpu.CompilerParams(
        dimension_semantics=("parallel", "parallel", "arbitrary"),
        vmem_limit_bytes=_VMEM_LIMIT)

    if residual is not None:
        kern = functools.partial(_mm_affine_res_kernel, relu=relu)
        in_specs = [a_spec, b_spec, v_spec, v_spec, o_spec]   # residual indexed like out
        args = (a16, b, s, t, r16)
    else:
        kern = functools.partial(_mm_affine_kernel, relu=relu)
        in_specs = [a_spec, b_spec, v_spec, v_spec]
        args = (a16, b, s, t)

    return pl.pallas_call(
        kern,
        out_shape=jax.ShapeDtypeStruct((M, Np), out_dtype),
        grid_spec=pltpu.PrefetchScalarGridSpec(
            num_scalar_prefetch=0, grid=grid,
            in_specs=in_specs, out_specs=o_spec, scratch_shapes=scratch),
        compiler_params=cparams,
        cost_estimate=cost,
    )(*args)


def conv2d_bn_act(x, cw, *, ksize, stride, padding, relu, residual=None,
                  out_dtype=jnp.bfloat16):
    """x: (N,H,W,Cp) NHWC bf16 with Cp equal to the weight pack's Cin (padded).
    Output keeps the packed (padded) channel width -- no slice + re-pad between layers.
    1x1 convs skip im2col entirely."""
    N, H, W, Cin = x.shape
    Ho = (H + 2 * padding - ksize) // stride + 1
    Wo = (W + 2 * padding - ksize) // stride + 1
    if ksize == 1 and padding == 0:
        xs = x if stride == 1 else x[:, ::stride, ::stride, :]
        a = xs.reshape(N * Ho * Wo, Cin)
    else:
        # TODO(synk): fold the (kh,kw) taps into the GEMM grid instead of materializing
        # the im2col matrix (remaining top HBM saving from the perf review).
        xp = (jnp.pad(x, ((0, 0), (padding, padding), (padding, padding), (0, 0)))
              if padding else x)
        cols = [xp[:, di:di + (Ho - 1) * stride + 1:stride,
                    dj:dj + (Wo - 1) * stride + 1:stride, :]
                for di in range(ksize) for dj in range(ksize)]
        a = jnp.concatenate(cols, axis=-1).reshape(N * Ho * Wo, ksize * ksize * Cin)
    res2d = None if residual is None else residual.reshape(N * Ho * Wo, -1)
    y = matmul_affine(a, cw["b"], cw["s"], cw["t"], relu=relu, residual=res2d,
                      out_dtype=out_dtype)
    return y.reshape(N, Ho, Wo, -1)


def maxpool_3x3_s2_p1(x):
    """PyTorch MaxPool2d(3, stride=2, padding=1). The input is post-ReLU (>= 0), so a
    0-pad is exactly equivalent to -inf padding and cheaper; the 9 strided taps are a
    fused jnp.maximum tree (no 9x stacked tensor).
    TODO(synk): move into a tiled Pallas kernel with in-kernel strided taps."""
    N, H, W, C = x.shape
    k, s, pad = 3, 2, 1
    Ho = (H + 2 * pad - k) // s + 1
    Wo = (W + 2 * pad - k) // s + 1
    xp = jnp.pad(x, ((0, 0), (pad, pad), (pad, pad), (0, 0)))
    out = None
    for di in range(k):
        for dj in range(k):
            v = xp[:, di:di + (Ho - 1) * s + 1:s, dj:dj + (Wo - 1) * s + 1:s, :]
            out = v if out is None else jnp.maximum(out, v)
    return out


def global_avg_pool(x):
    """AdaptiveAvgPool2d((1,1)) + flatten -> (N, C); tiled Pallas kernel (grid over batch)."""
    N, H, W, C = x.shape
    hw = H * W
    x3 = x.reshape(N, hw, C)
    out = pl.pallas_call(
        _mean_reduce_kernel,
        out_shape=jax.ShapeDtypeStruct((N, 1, C), jnp.float32),
        grid_spec=pltpu.PrefetchScalarGridSpec(
            num_scalar_prefetch=0, grid=(N,),
            in_specs=[pl.BlockSpec((1, hw, C), lambda n: (n, 0, 0))],
            out_specs=pl.BlockSpec((1, 1, C), lambda n: (n, 0, 0))),
        compiler_params=pltpu.CompilerParams(
            dimension_semantics=("parallel",), vmem_limit_bytes=_VMEM_LIMIT),
    )(x3)
    return out.reshape(N, C)


# ----------------------------- parameters ------------------------------

class _KeyGen:
    def __init__(self, seed):
        self._key = jax.random.PRNGKey(seed)
        self._n = 0

    def __call__(self):
        self._n += 1
        return jax.random.fold_in(self._key, self._n)


def _pack_conv_bn(kg, out_c, in_c, ksize, in_c_pack=None):
    """Synthetic conv+BN, folded and packed ONCE at init.

    Weight -> (kh*kw*in_c_pack, Np) bf16 with in_c_pack matching the (channel-padded)
    activation that will feed this layer and Np = round_up(out_c, 128); BN folded into
    (scale, bias) f32 rows that are zero on the padded output channels, so padding stays
    exactly 0 through the whole network.
    """
    in_c_pack = in_c if in_c_pack is None else in_c_pack
    fan_in = in_c * ksize * ksize
    w = jax.random.normal(kg(), (out_c, in_c, ksize, ksize), jnp.float32) * np.sqrt(2.0 / fan_in)
    gamma = 1.0 + 0.1 * jax.random.normal(kg(), (out_c,), jnp.float32)
    beta = 0.1 * jax.random.normal(kg(), (out_c,), jnp.float32)
    mean = 0.1 * jax.random.normal(kg(), (out_c,), jnp.float32)
    var = 1.0 + 0.1 * jnp.abs(jax.random.normal(kg(), (out_c,), jnp.float32))
    scale = gamma / jnp.sqrt(var + _EPS)                 # folded inference BatchNorm
    bias = beta - mean * scale

    K = ksize * ksize * in_c_pack
    Np = _round_up(out_c, 128)
    w_khwc = jnp.transpose(w, (2, 3, 1, 0))              # (kh, kw, in_c, out_c)
    bfull = jnp.zeros((ksize, ksize, in_c_pack, Np), jnp.bfloat16)
    bfull = bfull.at[:, :, :in_c, :out_c].set(w_khwc.astype(jnp.bfloat16))
    return {
        "b": bfull.reshape(K, Np),
        "s": jnp.zeros((1, Np), jnp.float32).at[0, :out_c].set(scale),
        "t": jnp.zeros((1, Np), jnp.float32).at[0, :out_c].set(bias),
    }


def init_encoder_params(embed_size, seed=0):
    kg = _KeyGen(seed)
    params = {"stem": _pack_conv_bn(kg, 64, 3, 7)}       # raw image has 3 channels
    layers = []
    in_c, in_cp = 64, 128                                # stem output stored 128 wide
    for width, nblocks, stride in _RESNET50_CFG:
        wp = _round_up(width, 128)
        blocks = []
        for bi in range(nblocks):
            s = stride if bi == 0 else 1
            blk = {
                "conv1": _pack_conv_bn(kg, width, in_c, 1, in_cp),
                "conv2": _pack_conv_bn(kg, width, width, 3, wp),
                "conv3": _pack_conv_bn(kg, width * 4, width, 1, wp),
            }
            if s != 1 or in_c != width * 4:
                blk["down"] = _pack_conv_bn(kg, width * 4, in_c, 1, in_cp)
            blocks.append(blk)
            in_c, in_cp = width * 4, _round_up(width * 4, 128)
        layers.append(blocks)
    params["layers"] = layers
    # nn.Linear(2048, embed_size) default init, run through the same fused GEMM (scale=1).
    lim = 1.0 / np.sqrt(in_c)
    fc_w = jax.random.uniform(kg(), (embed_size, in_c), jnp.float32, -lim, lim)
    fc_b = jax.random.uniform(kg(), (embed_size,), jnp.float32, -lim, lim)
    Npf = _round_up(embed_size, 128)
    params["fc"] = {
        "b": jnp.zeros((in_c, Npf), jnp.bfloat16).at[:, :embed_size].set(
            fc_w.T.astype(jnp.bfloat16)),
        "s": jnp.zeros((1, Npf), jnp.float32).at[0, :embed_size].set(1.0),
        "t": jnp.zeros((1, Npf), jnp.float32).at[0, :embed_size].set(fc_b),
    }
    return params


# ----------------------------- forward ------------------------------

def _bottleneck(x, blk, stride):
    y = conv2d_bn_act(x, blk["conv1"], ksize=1, stride=1, padding=0, relu=True)
    y = conv2d_bn_act(y, blk["conv2"], ksize=3, stride=stride, padding=1, relu=True)
    if "down" in blk:
        identity = conv2d_bn_act(x, blk["down"], ksize=1, stride=stride, padding=0, relu=False)
    else:
        identity = x
    # residual add + ReLU fused into the conv3 GEMM epilogue (no separate HBM pass)
    return conv2d_bn_act(y, blk["conv3"], ksize=1, stride=1, padding=0, relu=True,
                         residual=identity)


def encoder_forward(params, images_nchw, *, embed_size):
    # PyTorch NCHW -> internal NHWC (channels on the 128-wide lane axis), bf16 activations.
    x = jnp.transpose(images_nchw, (0, 2, 3, 1)).astype(jnp.bfloat16)
    # stem: 7x7/s2 conv + folded BN + ReLU, then 3x3/s2 max-pool
    x = conv2d_bn_act(x, params["stem"], ksize=7, stride=2, padding=3, relu=True)
    x = maxpool_3x3_s2_p1(x)
    # 4 stages of Bottleneck blocks (activations stay channel-padded between layers)
    for (width, _, stride), blocks in zip(_RESNET50_CFG, params["layers"]):
        for bi, blk in enumerate(blocks):
            x = _bottleneck(x, blk, stride if bi == 0 else 1)
    # adaptive avg pool (1,1) + flatten, then Linear(2048, embed_size) via the fused GEMM
    feats = global_avg_pool(x)                                  # (N, 2048) f32
    emb = matmul_affine(feats, params["fc"]["b"], params["fc"]["s"], params["fc"]["t"],
                        relu=False, out_dtype=jnp.float32)
    return emb[:, :embed_size]


# ----------------------------- main ------------------------------

if __name__ == "__main__":
    embed_size = 32
    params = init_encoder_params(embed_size, seed=0)
    images = jax.random.normal(jax.random.PRNGKey(0), (2, 3, 32, 32), jnp.float32)  # NCHW

    # --- sanity 1: fused GEMM epilogue (odd M/K exercise the full-extent block path) ---
    ka, kb = jax.random.split(jax.random.PRNGKey(1))
    a = jax.random.normal(ka, (13, 37), jnp.float32)
    bm = jax.random.normal(kb, (37, 20), jnp.float32)
    s = jnp.linspace(0.5, 1.5, 20).astype(jnp.float32)
    t = jnp.linspace(-1.0, 1.0, 20).astype(jnp.float32)
    b_p = jnp.zeros((37, 128), jnp.bfloat16).at[:, :20].set(bm.astype(jnp.bfloat16))
    s_p = jnp.zeros((1, 128), jnp.float32).at[0, :20].set(s)
    t_p = jnp.zeros((1, 128), jnp.float32).at[0, :20].set(t)
    got = matmul_affine(a, b_p, s_p, t_p, relu=True, out_dtype=jnp.float32)[:, :20]
    a16 = a.astype(jnp.bfloat16).astype(jnp.float32)
    b16 = bm.astype(jnp.bfloat16).astype(jnp.float32)
    want = jnp.maximum(a16 @ b16 * s + t, 0.0)
    np.testing.assert_allclose(np.asarray(got), np.asarray(want), rtol=1e-2, atol=1e-2)

    # --- sanity 2: 3x3 conv + folded BN + ReLU (+ fused residual) vs f32 reference ---
    def _ref_conv(x, cw, ksize, stride, padding, relu, residual=None):
        xf = x.astype(jnp.float32)
        if padding:
            xf = jnp.pad(xf, ((0, 0), (padding, padding), (padding, padding), (0, 0)))
        Nn, Hp, Wp, C = xf.shape
        Ho = (Hp - ksize) // stride + 1
        Wo = (Wp - ksize) // stride + 1
        Np = cw["b"].shape[1]
        w4 = cw["b"].astype(jnp.float32).reshape(ksize, ksize, C, Np)
        acc = jnp.zeros((Nn, Ho, Wo, Np), jnp.float32)
        for di in range(ksize):
            for dj in range(ksize):
                v = xf[:, di:di + (Ho - 1) * stride + 1:stride,
                          dj:dj + (Wo - 1) * stride + 1:stride, :]
                acc = acc + jnp.einsum("nhwc,co->nhwo", v, w4[di, dj])
        y = acc * cw["s"][0] + cw["t"][0]
        if residual is not None:
            y = y + residual.astype(jnp.float32)
        return jnp.maximum(y, 0.0) if relu else y

    kg_t = _KeyGen(7)
    cw_t = _pack_conv_bn(kg_t, out_c=64, in_c=64, ksize=3, in_c_pack=128)
    xt = jax.random.normal(jax.random.PRNGKey(2), (1, 8, 8, 128), jnp.float32).astype(jnp.bfloat16)
    rt = jax.random.normal(jax.random.PRNGKey(3), (1, 8, 8, 128), jnp.float32).astype(jnp.bfloat16)
    for stride in (1, 2):
        res = rt if stride == 1 else None
        got_c = conv2d_bn_act(xt, cw_t, ksize=3, stride=stride, padding=1, relu=True,
                              residual=res, out_dtype=jnp.float32)
        want_c = _ref_conv(xt, cw_t, 3, stride, 1, True, residual=res)
        np.testing.assert_allclose(np.asarray(got_c), np.asarray(want_c), rtol=2e-2, atol=2e-2)

    # --- full forward ---
    fwd = jax.jit(functools.partial(encoder_forward, embed_size=embed_size))
    out = jax.block_until_ready(fwd(params, images))
    assert out.shape == (2, embed_size), out.shape
    assert bool(jnp.all(jnp.isfinite(out)))
    print("KERNEL_OK")
</pallas_src>

<mosaic_0001>
module attributes {stable_mosaic.version = 11 : i64} {
  func.func @_mm_affine_kernel(%arg0: i32, %arg1: i32, %arg2: i32, %arg3: memref<13x37xbf16, #tpu.memory_space<vmem>>, %arg4: memref<37x128xbf16, #tpu.memory_space<vmem>>, %arg5: memref<1x128xf32, #tpu.memory_space<vmem>>, %arg6: memref<1x128xf32, #tpu.memory_space<vmem>>, %arg7: memref<13x128xf32, #tpu.memory_space<vmem>>, %arg8: memref<13x128xf32, #tpu.memory_space<vmem>>) attributes {dimension_semantics = [#tpu.dimension_semantics<parallel>, #tpu.dimension_semantics<parallel>, #tpu.dimension_semantics<arbitrary>], iteration_bounds = array<i64: 1, 1, 1>, scalar_prefetch = 0 : i64, scratch_operands = 1 : i64, tpu.core_type = #tpu.core_type<tc>, window_params = [{transform_indices = @transform_0, window_bounds = array<i64: 13, 37>}, {transform_indices = @transform_1, window_bounds = array<i64: 37, 128>}, {transform_indices = @transform_2, window_bounds = array<i64: 1, 128>}, {transform_indices = @transform_3, window_bounds = array<i64: 1, 128>}, {transform_indices = @transform_4, window_bounds = array<i64: 13, 128>}]} {
    %c0_i32 = arith.constant 0 : i32
    %0 = arith.cmpi eq, %arg2, %c0_i32 : i32
    %1 = arith.extui %0 : i1 to i32
    %c0_i32_0 = arith.constant 0 : i32
    %2 = arith.cmpi ne, %1, %c0_i32_0 : i32
    scf.if %2 {
      %cst_10 = arith.constant 0.000000e+00 : f32
      %12 = vector.broadcast %cst_10 : f32 to vector<13x128xf32>
      %c0_11 = arith.constant 0 : index
      %c0_12 = arith.constant 0 : index
      %13 = vector.load %arg8[%c0_11, %c0_12] : memref<13x128xf32, #tpu.memory_space<vmem>>, vector<13x128xf32>
      tpu.vector_store %arg8[%c0_11, %c0_12], %12 {strides = array<i32>} : memref<13x128xf32, #tpu.memory_space<vmem>>, vector<13x128xf32>,
    } else {
    }
    %c0 = arith.constant 0 : index
    %c0_1 = arith.constant 0 : index
    %3 = vector.load %arg8[%c0, %c0_1] : memref<13x128xf32, #tpu.memory_space<vmem>>, vector<13x128xf32>
    %c0_2 = arith.constant 0 : index
    %c0_3 = arith.constant 0 : index
    %4 = vector.load %arg3[%c0_2, %c0_3] : memref<13x37xbf16, #tpu.memory_space<vmem>>, vector<13x37xbf16>
    %c0_4 = arith.constant 0 : index
    %c0_5 = arith.constant 0 : index
    %5 = vector.load %arg4[%c0_4, %c0_5] : memref<37x128xbf16, #tpu.memory_space<vmem>>, vector<37x128xbf16>
    %cst = arith.constant dense<0.000000e+00> : vector<13x128xf32>
    %6 = tpu.matmul %4, %5, %cst {dimension_numbers = #tpu.dot_dimension_numbers<[1], [0], [0], [1], [0, 0, 1, 1], [], []>} : vector<13x37xbf16>, vector<37x128xbf16>, vector<13x128xf32> -> vector<13x128xf32>
    %7 = arith.addf %3, %6 : vector<13x128xf32>
    %c0_6 = arith.constant 0 : index
    %c0_7 = arith.constant 0 : index
    %8 = vector.load %arg8[%c0_6, %c0_7] : memref<13x128xf32, #tpu.memory_space<vmem>>, vector<13x128xf32>
    tpu.vector_store %arg8[%c0_6, %c0_7], %7 {strides = array<i32>} : memref<13x128xf32, #tpu.memory_space<vmem>>, vector<13x128xf32>,
    %c0_i32_8 = arith.constant 0 : i32
    %9 = arith.cmpi eq, %arg2, %c0_i32_8 : i32
    %10 = arith.extui %9 : i1 to i32
    %c0_i32_9 = arith.constant 0 : i32
    %11 = arith.cmpi ne, %10, %c0_i32_9 : i32
    scf.if %11 {
      %c0_10 = arith.constant 0 : index
      %c0_11 = arith.constant 0 : index
      %12 = vector.load %arg8[%c0_10, %c0_11] : memref<13x128xf32, #tpu.memory_space<vmem>>, vector<13x128xf32>
      %c0_12 = arith.constant 0 : index
      %c0_13 = arith.constant 0 : index
      %13 = vector.load %arg5[%c0_12, %c0_13] : memref<1x128xf32, #tpu.memory_space<vmem>>, vector<1x128xf32>
      %14 = vector.broadcast %13 : vector<1x128xf32> to vector<13x128xf32>
      %15 = arith.mulf %12, %14 : vector<13x128xf32>
      %c0_14 = arith.constant 0 : index
      %c0_15 = arith.constant 0 : index
      %16 = vector.load %arg6[%c0_14, %c0_15] : memref<1x128xf32, #tpu.memory_space<vmem>>, vector<1x128xf32>
      %17 = vector.broadcast %16 : vector<1x128xf32> to vector<13x128xf32>
      %18 = arith.addf %15, %17 : vector<13x128xf32>
      %cst_16 = arith.constant 0.000000e+00 : f32
      %19 = vector.broadcast %cst_16 : f32 to vector<13x128xf32>
      %20 = arith.maximumf %18, %19 : vector<13x128xf32>
      %c0_17 = arith.constant 0 : index
      %c0_18 = arith.constant 0 : index
      %21 = vector.load %arg7[%c0_17, %c0_18] : memref<13x128xf32, #tpu.memory_space<vmem>>, vector<13x128xf32>
      tpu.vector_store %arg7[%c0_17, %c0_18], %20 {strides = array<i32>} : memref<13x128xf32, #tpu.memory_space<vmem>>, vector<13x128xf32>,
    } else {
    }
    return
  }
  func.func @transform_0(%arg0: i32, %arg1: i32, %arg2: i32) -> (i32, i32) {
    %c0_i32 = arith.constant 0 : i32
    return %arg0, %arg2 : i32, i32
  }
  func.func @transform_1(%arg0: i32, %arg1: i32, %arg2: i32) -> (i32, i32) {
    %c0_i32 = arith.constant 0 : i32
    return %arg2, %arg1 : i32, i32
  }
  func.func @transform_2(%arg0: i32, %arg1: i32, %arg2: i32) -> (i32, i32) {
    %c0_i32 = arith.constant 0 : i32
    %c0_i32_0 = arith.constant 0 : i32
    return %c0_i32, %arg1 : i32, i32
  }
  func.func @transform_3(%arg0: i32, %arg1: i32, %arg2: i32) -> (i32, i32) {
    %c0_i32 = arith.constant 0 : i32
    %c0_i32_0 = arith.constant 0 : i32
    return %c0_i32, %arg1 : i32, i32
  }
  func.func @transform_4(%arg0: i32, %arg1: i32, %arg2: i32) -> (i32, i32) {
    %c0_i32 = arith.constant 0 : i32
    return %arg0, %arg1 : i32, i32
  }
}

</mosaic_0001>

<llo_original>
// kernel: tpu_custom_call.1
$region0: #{tpu_custom_call.1}
  #allocation0 [shape = 'u32[]', space=smem, size = 0x4, offset = 0x4, fixed_abs, tag = 'smem constant byte address 0x4 - core index']
  #allocation1 [shape = 'u32[144,128]{1,0:T(1,128)}', space=vmem, size = 0x12000, scoped, tag = 'internal scratch']
  #allocation2 [shape = 'f32[13,128]{1,0:T(8,128)}', space=vmem, size = 0x2000, scoped, tag = 'scratch operand']
  %s0 = inlined_call_operand.hbm [shape: bf16[13,37], index: 0, kind: input, shape index: {}]
  %s1 = inlined_call_operand.hbm [shape: bf16[37,128], index: 1, kind: input, shape index: {}]
  %s2 = inlined_call_operand.vmem [shape: f32[1,128], index: 2, kind: input, shape index: {}]
  %s3 = inlined_call_operand.vmem [shape: f32[1,128], index: 3, kind: input, shape index: {}]
  %s4 = inlined_call_operand.hbm [shape: f32[13,128], index: 4, kind: output, shape index: {}]
  %s5 = sld [smem:[#allocation0]]
  $region42: #{tpu_custom_call.1} parent=0
    _
  %s7 = ssub.s32 1, %s5
  %s8 = scalar_select 0, %s7, %s5
  $region1: #{tpu_custom_call.1} parent=0
    #allocation3 [shape = 'u8[4096]{0}', space=vmem, size = 0x1000, scoped, tag = 'input window, operand 0, single buffered']
    #allocation4 [shape = 's32[1]{0}', space=sflag, size = 0x4, scoped, tag = 'scoped memory for tpu_custom_call.1']
    #allocation5 [shape = 's32[1]{0}', space=sflag, size = 0x4, scoped, tag = 'scoped memory for tpu_custom_call.1']
    #allocation6 [shape = 'u8[10240]{0}', space=vmem, size = 0x2800, scoped, tag = 'input window, operand 1, single buffered']
    #allocation7 [shape = 's32[1]{0}', space=sflag, size = 0x4, scoped, tag = 'scoped memory for tpu_custom_call.1']
    #allocation8 [shape = 'u8[8192]{0}', space=vmem, size = 0x2000, scoped, tag = 'output window, operand 0, single buffered']
    %9 = vsyncpa [#allocation4], 0
    %10 = vsyncpa [#allocation7], 0
    %11 = vsyncpa [#allocation5], 0
    // Predicated region
    $region2: #{tpu_custom_call.1} parent=1 // pred_check
      _
    $region3: #{tpu_custom_call.1} parent=1 // pred_check_branch
      %13 = sbr.rel (0) target = $region5
    $region4: #{tpu_custom_call.1} parent=1 // pred_region
      %s15 = ssub.s32 128, 128
      %16 = vsyncadd [#allocation4], %s15
      %s17 = sshll.u32 [#allocation3], 4
      %s18 = int_to_ptr.vmem [resolvable:$true] %s17
      %23 = dma.hbm_to_vmem [thread:$0]  %s0, 128, %s18, [#allocation4], 64, 64, 4
    $region5: #{tpu_custom_call.1} parent=1 // pred_fallthru
      _
    // Predicated region
    $region6: #{tpu_custom_call.1} parent=1 // pred_check
      _
    $region7: #{tpu_custom_call.1} parent=1 // pred_check_branch
      %25 = sbr.rel (0) target = $region9
    $region8: #{tpu_custom_call.1} parent=1 // pred_region
      %s27 = ssub.s32 320, 320
      %28 = vsyncadd [#allocation7], %s27
      %s29 = sshll.u32 [#allocation6], 4
      %s30 = int_to_ptr.vmem [resolvable:$true] %s29
      %35 = dma.hbm_to_vmem [thread:$0]  %s1, 320, %s30, [#allocation7], 64, 64, 4
    $region9: #{tpu_custom_call.1} parent=1 // pred_fallthru
      _
    // Predicated region
    $region10: #{tpu_custom_call.1} parent=1 // pred_check
      _
    $region11: #{tpu_custom_call.1} parent=1 // pred_check_branch
      %37 = sbr.rel (0) target = $region13
    $region12: #{tpu_custom_call.1} parent=1 // pred_region
      _
    $region13: #{tpu_custom_call.1} parent=1 // pred_fallthru
      _
    // Predicated region
    $region14: #{tpu_custom_call.1} parent=1 // pred_check
      _
    $region15: #{tpu_custom_call.1} parent=1 // pred_check_branch
      %39 = sbr.rel (0) target = $region17
    $region16: #{tpu_custom_call.1} parent=1 // pred_region
      _
    $region17: #{tpu_custom_call.1} parent=1 // pred_fallthru
      _
    // Predicated region
    $region18: #{tpu_custom_call.1} parent=1 // pred_check
      _
    $region19: #{tpu_custom_call.1} parent=1 // pred_check_branch
      %41 = sbr.rel (0) target = $region21
    $region20: #{tpu_custom_call.1} parent=1 // pred_region
      %42 = dma.done [#allocation4], 128
    $region21: #{tpu_custom_call.1} parent=1 // pred_fallthru
      _
    // Predicated region
    $region22: #{tpu_custom_call.1} parent=1 // pred_check
      _
    $region23: #{tpu_custom_call.1} parent=1 // pred_check_branch
      %44 = sbr.rel (0) target = $region25
    $region24: #{tpu_custom_call.1} parent=1 // pred_region
      %45 = dma.done [#allocation7], 320
    $region25: #{tpu_custom_call.1} parent=1 // pred_fallthru
      _
    %p47 = scmp.eq.s32.totalorder 0, 0
    // Predicated region
    $region26: #{tpu_custom_call.1} parent=1 // pred_check
      %p48 = pneg %p47
    $region27: #{tpu_custom_call.1} parent=1 // pred_check_branch
      %50 = sbr.rel (%p48) target = $region29
    $region28: #{tpu_custom_call.1} parent=1 // pred_region
      %51 = vst [vmem:[#allocation2] sm:$0xff] 0.0
      %52 = vst [vmem:[#allocation2 + $0x8] sm:$0x1f] 0.0
    $region29: #{tpu_custom_call.1} parent=1 // pred_fallthru
      _
    %v53 = vld [vmem:[#allocation2] sm:$0xff]
    %v54 = vld [vmem:[#allocation2 + $0x8] sm:$0x1f]
    %v55 = vld [vmem:[#allocation3] sm:$0xf]
    %v56 = vld [vmem:[#allocation3 + $0x4] sm:$0x7]
    %v57 = vld [vmem:[#allocation6] sm:$0xf]
    %v58 = vld [vmem:[#allocation6 + $0x4] sm:$0xf]
    %v59 = vld [vmem:[#allocation6 + $0x8] sm:$0xf]
    %v60 = vld [vmem:[#allocation6 + $0xc] sm:$0xf]
    %v61 = vld [vmem:[#allocation6 + $0x10] sm:$0x7]
    %v64 = vunpack.c.l.b16 %v55
    %v65 = vunpack.c.l.b16 %v56
    %v66 = vpack.c.b16 %v65, %v64
    %v72 = vunpack.c.l.b16 %v57
    %v73 = vunpack.c.l.b16 %v58
    %v74 = vunpack.c.l.b16 %v59
    %v75 = vunpack.c.l.b16 %v60
    %v76 = vunpack.c.l.b16 %v61
    %v77 = vpack.c.b16 %v73, %v72
    %v78 = vpack.c.b16 %v75, %v74
    %v79 = vpack.c.b16 %v76, %v76
    %vm82 = vcmask 302080
    %v84 = vsel %vm82, %v66, 0
    %vm86 = vcmask 1041408
    %vm87 = vcmask 1042432
    %v88 = vsel %vm86, 4294967295, 65535
    %v89 = vsel %vm87, %v88, 0
    %v91 = vand.u32 %v79, %v89
    %93 = vmatprep.subr.bf16.mxu0 0
    %94 = vmatpush1.bf16.msra.mxu0 %v77
    %95 = vmatprep.subr.bf16.mxu0 0
    %96 = vmatpush1.bf16.msra.mxu0 %v78
    %97 = vmatprep.subr.bf16.mxu0 0
    %98 = vmatpush1.bf16.msra.mxu0 %v91
    %99 = vmatprep.subr.bf16.mxu0 0
    %100 = vmatpush1.bf16.msra.mxu0 0
    %101 = vmatprep.subr.bf16.mxu0 0
    %102 = vmatpush1.bf16.msra.mxu0 0
    %103 = vmatprep.subr.bf16.mxu0 0
    %104 = vmatpush1.bf16.msra.mxu0 0
    %105 = vmatprep.subr.bf16.mxu0 0
    %106 = vmatpush1.bf16.msra.mxu0 0
    %107 = vmatprep.subr.bf16.mxu0 0
    %108 = vmatpush1.bf16.msra.mxu0 0
    %109 = vmatprep.subr.bf16.mxu0 0
    %110 = vmatpush1.bf16.msra.mxu0 0
    %111 = vmatprep.subr.bf16.mxu0 0
    %112 = vmatpush1.bf16.msra.mxu0 0
    %113 = vmatprep.subr.bf16.mxu0 0
    %114 = vmatpush1.bf16.msra.mxu0 0
    %115 = vmatprep.subr.bf16.mxu0 0
    %116 = vmatpush1.bf16.msra.mxu0 0
    %117 = vmatprep.subr.bf16.mxu0 0
    %118 = vmatpush1.bf16.msra.mxu0 0
    %119 = vmatprep.subr.bf16.mxu0 0
    %120 = vmatpush1.bf16.msra.mxu0 0
    %121 = vmatprep.subr.bf16.mxu0 0
    %122 = vmatpush1.bf16.msra.mxu0 0
    %123 = vmatprep.subr.bf16.mxu0 0
    %124 = vmatpush1.bf16.msra.mxu0 0
    %125 = vmatprep.mubr.bf16.mxu0 0
    %126 = vmatmul.mubr.bf16.gmra.mrb[0].mxu0 %v84
    %v127 = vpop.f32.mrb[0].mxu0
    %v128 = vadd.f32 0.0, %v127
    %v129 = vpop.f32.mrb[0].mxu0
    %v130 = vpop.f32.mrb[0].mxu0
    %v131 = vadd.f32 0.0, %v130
    %v132 = vpop.f32.mrb[0].mxu0
    %133 = vdwg.mxu0
    %v134 = vadd.f32 %v53, %v128
    %v135 = vadd.f32 %v54, %v131
    %136 = vst [vmem:[#allocation2] sm:$0xff] %v134
    %137 = vst [vmem:[#allocation2 + $0x8] sm:$0x1f] %v135
    // Predicated region
    $region30: #{tpu_custom_call.1} parent=1 // pred_check
      %p138 = pneg %p47
    $region31: #{tpu_custom_call.1} parent=1 // pred_check_branch
      %140 = sbr.rel (%p138) target = $region33
    $region32: #{tpu_custom_call.1} parent=1 // pred_region
      %v141 = vld [vmem:[#allocation2] sm:$0xff]
      %v142 = vld [vmem:[#allocation2 + $0x8] sm:$0x1f]
      %v143 = vld [vmem:[%s2] sm:$0x1]
      %v145 = vlaneseq
      %v146 = vshrl.u32 %v145, 7
      %v147 = vsub.s32 0, %v146
      %v148 = vrot.slane %v143, %v147
      %v150 = vmul.f32 %v141, %v148
      %v151 = vmul.f32 %v142, %v148
      %v152 = vld [vmem:[%s3] sm:$0x1]
      %v154 = vlaneseq
      %v155 = vshrl.u32 %v154, 7
      %v156 = vsub.s32 0, %v155
      %v157 = vrot.slane %v152, %v156
      %v159 = vadd.f32 %v150, %v157
      %v160 = vadd.f32 %v151, %v157
      %v161 = vmax.f32 %v159, 0.0
      %v162 = vmax.f32 %v160, 0.0
      %163 = vst [vmem:[#allocation8] sm:$0xff] %v161
      %164 = vst [vmem:[#allocation8 + $0x8] sm:$0x1f] %v162
    $region33: #{tpu_custom_call.1} parent=1 // pred_fallthru
      _
    // Predicated region
    $region34: #{tpu_custom_call.1} parent=1 // pred_check
      _
    $region35: #{tpu_custom_call.1} parent=1 // pred_check_branch
      %166 = sbr.rel (0) target = $region37
    $region36: #{tpu_custom_call.1} parent=1 // pred_region
      %s168 = ssub.s32 256, 256
      %169 = vsyncadd [#allocation5], %s168
      %s170 = sshll.u32 [#allocation8], 4
      %s171 = int_to_ptr.vmem [resolvable:$true] %s170
      %176 = dma.vmem_to_hbm [thread:$0]  %s171, 256, %s4, [#allocation5], 128, 128, 8
    $region37: #{tpu_custom_call.1} parent=1 // pred_fallthru
      _
    // Predicated region
    $region38: #{tpu_custom_call.1} parent=1 // pred_check
      _
    $region39: #{tpu_custom_call.1} parent=1 // pred_check_branch
      %178 = sbr.rel (0) target = $region41
    $region40: #{tpu_custom_call.1} parent=1 // pred_region
      %179 = dma.done [#allocation5], 256
    $region41: #{tpu_custom_call.1} parent=1 // pred_fallthru
      _
    %180 = vsyncpa [#allocation4], 1
    %181 = vsyncpa [#allocation7], 1
    %182 = vsyncpa [#allocation5], 1

</llo_original>
